<compile_context>
chip_gen: v5e
topology: v5e:2x2
jax: 0.10.0
libtpu: 0.0.40
codegen_flags: <defaults>
</compile_context>

<pallas_src>
import jax
import jax.numpy as jnp
from jax.experimental import pallas as pl
from jax.experimental.pallas import tpu as pltpu


def _stack_mlp_sum_kernel(x_ref, w1_ref, b1_ref, w2_ref, b2_ref, w3_ref,
                          out_ref, acc_ref):
    """Fused wide-MLP chain over one x tile; per-core partial of sum(model(x)).

    Grid = (cores, steps): axis 0 ("parallel") splits the row range across
    TensorCores, axis 1 ("arbitrary") is the sequential N reduction.
    acc_ref : (1, MH_pad) f32 VMEM scratch — lane-dense running column-sum of h2.
    out_ref : (1, 8, 128) f32 block — this core's partial, written once at the
              last reduction step (full-tile unmasked store).
    """
    i = pl.program_id(1)
    last = pl.num_programs(1) - 1

    @pl.when(i == 0)
    def _():
        acc_ref[...] = jnp.zeros_like(acc_ref)

    # bf16 operands on the MXU, f32 accumulation; f32 epilogue (bias/ReLU).
    x = x_ref[...]                                                  # bf16
    h1 = jnp.dot(x, w1_ref[...],
                 preferred_element_type=jnp.float32) + b1_ref[...]  # f32
    h1 = jnp.maximum(h1, 0.0)
    h2 = jnp.dot(h1.astype(jnp.bfloat16), w2_ref[...],
                 preferred_element_type=jnp.float32) + b2_ref[...]  # f32
    h2 = jnp.maximum(h2, 0.0)

    # Sublane reduce on the XLU slot (free filler under the matmul chain);
    # the w3 contraction is deferred to a single final reduction.
    acc_ref[...] += jnp.sum(h2, axis=0, keepdims=True)

    @pl.when(i == last)
    def _():
        # sum_rows(h2_total) . w3  ==  sum(h2_total @ w3)  — one final reduce.
        total = jnp.sum(acc_ref[...] * w3_ref[...])
        out_ref[...] = jnp.full(out_ref.shape, total, dtype=out_ref.dtype)


def build_fused_stack_params(model_params):
    """Fuse all sub-models into one wide matmul chain.  Call ONCE at build time.

    model_params: ordered dict {name: {"w1","b1","w2","b2","w3","b3"}} with
      w1: [D, H], b1: [1, H], w2: [H, H], b2: [1, H], w3: [H, 1], b3: [1, 1].

    Returns fused device arrays:
      w1: [D, MHp] bf16, b1/b2/w3: [1, MHp] f32, w2: [MHp, MHp] bf16 (block
      diagonal), b3_total: f32 scalar; MHp = M*H rounded up to a multiple of 128.
    """
    keys = list(model_params)                      # ModuleDict order
    m = len(keys)
    h = model_params[keys[0]]["w1"].shape[1]
    mh = m * h
    mh_pad = max(128, ((mh + 127) // 128) * 128)
    pad = mh_pad - mh

    w1 = jnp.concatenate([model_params[k]["w1"] for k in keys], axis=1)   # [D, MH]
    b1 = jnp.concatenate([model_params[k]["b1"] for k in keys], axis=1)   # [1, MH]
    w2 = jax.scipy.linalg.block_diag(                                     # [MH, MH]
        *[model_params[k]["w2"] for k in keys])
    b2 = jnp.concatenate([model_params[k]["b2"] for k in keys], axis=1)   # [1, MH]
    w3 = jnp.concatenate([model_params[k]["w3"].T for k in keys], axis=1) # [1, MH]
    b3_total = sum(model_params[k]["b3"][0, 0] for k in keys)             # scalar

    if pad:
        # Zero-padding the MH (column) axis is exact: padded biases are 0, so
        # padded h1/h2 columns are 0 after ReLU and padded w3 entries are 0.
        w1 = jnp.pad(w1, ((0, 0), (0, pad)))
        b1 = jnp.pad(b1, ((0, 0), (0, pad)))
        w2 = jnp.pad(w2, ((0, pad), (0, pad)))
        b2 = jnp.pad(b2, ((0, 0), (0, pad)))
        w3 = jnp.pad(w3, ((0, 0), (0, pad)))

    return {
        "w1": w1.astype(jnp.bfloat16),
        "b1": b1.astype(jnp.float32),
        "w2": w2.astype(jnp.bfloat16),
        "b2": b2.astype(jnp.float32),
        "w3": w3.astype(jnp.float32),
        "b3_total": jnp.asarray(b3_total, jnp.float32),
    }


def stack_forward(x, fused, *, tile_n=4096):
    """Pallas equivalent of Stack.forward: sum of every model's total output.

    x: [N, D] (any float dtype; streamed as bf16).  fused: from
    build_fused_stack_params.  Returns shape (1,) float32.
    """
    n, d = x.shape
    d_w, mh_pad = fused["w1"].shape
    assert d == d_w, (d, d_w)

    # Split the N reduction across two TensorCores when row count allows
    # (near-2x on v7x; single-TC v5e/v6e just run the two halves sequentially).
    n_cores = 2 if (n % 2 == 0 and (n // 2) % 8 == 0) else 1
    rows_per_core = n // n_cores
    tile_n = min(tile_n, rows_per_core)
    assert rows_per_core % tile_n == 0 and tile_n % 8 == 0, (
        "N per core must be a multiple of tile_n (and tile_n of 8)")
    steps = rows_per_core // tile_n

    # Ideally x is already stored bf16 upstream; the cast fuses under jit.
    x_bf16 = x.astype(jnp.bfloat16)

    partials = pl.pallas_call(
        _stack_mlp_sum_kernel,
        out_shape=jax.ShapeDtypeStruct((n_cores, 8, 128), jnp.float32),
        grid_spec=pltpu.PrefetchScalarGridSpec(
            num_scalar_prefetch=0,
            grid=(n_cores, steps),
            in_specs=[
                pl.BlockSpec((tile_n, d), lambda c, i: (c * steps + i, 0)),  # x
                pl.BlockSpec((d, mh_pad), lambda c, i: (0, 0)),       # W1 (all)
                pl.BlockSpec((1, mh_pad), lambda c, i: (0, 0)),       # b1
                pl.BlockSpec((mh_pad, mh_pad), lambda c, i: (0, 0)),  # W2 blkdiag
                pl.BlockSpec((1, mh_pad), lambda c, i: (0, 0)),       # b2
                pl.BlockSpec((1, mh_pad), lambda c, i: (0, 0)),       # W3 row
            ],
            out_specs=pl.BlockSpec((1, 8, 128), lambda c, i: (c, 0, 0)),
            scratch_shapes=[pltpu.VMEM((1, mh_pad), jnp.float32)],
        ),
        compiler_params=pltpu.CompilerParams(
            dimension_semantics=("parallel", "arbitrary"),
            vmem_limit_bytes=32 * 1024 * 1024),
    )(x_bf16, fused["w1"], fused["b1"], fused["w2"], fused["b2"], fused["w3"])

    # b3 contributes exactly N * sum(b3_m); add once, then sum core partials.
    total = jnp.sum(partials[:, 0, 0]) + jnp.float32(n) * fused["b3_total"]
    return total.reshape(-1)                                        # shape (1,)


def _init_mlp_params(key, d, h):
    k1, k2, k3, k4, k5, k6 = jax.random.split(key, 6)
    return {
        "w1": jax.random.normal(k1, (d, h), jnp.float32) * 0.1,
        "b1": jax.random.normal(k2, (1, h), jnp.float32) * 0.1,
        "w2": jax.random.normal(k3, (h, h), jnp.float32) * 0.1,
        "b2": jax.random.normal(k4, (1, h), jnp.float32) * 0.1,
        "w3": jax.random.normal(k5, (h, 1), jnp.float32) * 0.1,
        "b3": jax.random.normal(k6, (1, 1), jnp.float32) * 0.1,
    }


if __name__ == "__main__":
    N, D, H = 64, 32, 32
    key = jax.random.PRNGKey(0)
    kx, km0, km1 = jax.random.split(key, 3)

    x = jax.random.normal(kx, (N, D), jnp.float32)

    # Two sub-models in the "ModuleDict" (deterministic synthetic weights).
    model_params = {
        "model_A": _init_mlp_params(km0, D, H),
        "model_B": _init_mlp_params(km1, D, H),
    }

    # Weight fusion is hoisted out of the forward path (done once here).
    fused = build_fused_stack_params(model_params)
    stack_apply = jax.jit(stack_forward)

    out = jax.block_until_ready(stack_apply(x, fused))

    # Pure-JAX references mirroring Stack.forward semantics.
    def ref_mlp_sum(xr, p, cast=None):
        w1, w2 = p["w1"], p["w2"]
        if cast is not None:
            xr, w1, w2 = xr.astype(cast), w1.astype(cast), w2.astype(cast)
        h1 = jnp.maximum(
            jnp.dot(xr, w1, preferred_element_type=jnp.float32) + p["b1"], 0.0)
        h1c = h1.astype(cast) if cast is not None else h1
        h2 = jnp.maximum(
            jnp.dot(h1c, w2, preferred_element_type=jnp.float32) + p["b2"], 0.0)
        return jnp.sum(h2 @ p["w3"] + p["b3"]).reshape(-1)

    ref_bf16 = sum(ref_mlp_sum(x, model_params[k], cast=jnp.bfloat16)
                   for k in model_params)
    ref_f32 = sum(ref_mlp_sum(x, model_params[k]) for k in model_params)

    assert out.shape == (1,), out.shape
    # Tight check against the bf16-operand / f32-accumulate reference.
    assert jnp.allclose(out, ref_bf16, rtol=1e-3, atol=1e-3), (out, ref_bf16)
    # Loose semantic sanity check against the full-f32 reference.
    assert jnp.allclose(out, ref_f32, rtol=5e-2, atol=2e-1), (out, ref_f32)

    # TODO(synk): Stack._reset_topology is stateful bookkeeping on sub-modules
    # and is not part of forward; it has no kernel equivalent.
    print("KERNEL_OK")
</pallas_src>

<mosaic_0001>
module attributes {stable_mosaic.version = 11 : i64} {
  func.func @_stack_mlp_sum_kernel(%arg0: i32, %arg1: i32, %arg2: memref<32x32xbf16, #tpu.memory_space<vmem>>, %arg3: memref<32x128xbf16, #tpu.memory_space<vmem>>, %arg4: memref<1x128xf32, #tpu.memory_space<vmem>>, %arg5: memref<128x128xbf16, #tpu.memory_space<vmem>>, %arg6: memref<1x128xf32, #tpu.memory_space<vmem>>, %arg7: memref<1x128xf32, #tpu.memory_space<vmem>>, %arg8: memref<1x8x128xf32, #tpu.memory_space<vmem>>, %arg9: memref<1x128xf32, #tpu.memory_space<vmem>>) attributes {dimension_semantics = [#tpu.dimension_semantics<parallel>, #tpu.dimension_semantics<arbitrary>], iteration_bounds = array<i64: 2, 1>, scalar_prefetch = 0 : i64, scratch_operands = 1 : i64, tpu.core_type = #tpu.core_type<tc>, window_params = [{transform_indices = @transform_0, window_bounds = array<i64: 32, 32>}, {pipeline_mode = #tpu.pipeline_mode<synchronous>, transform_indices = @transform_1, window_bounds = array<i64: 32, 128>}, {pipeline_mode = #tpu.pipeline_mode<synchronous>, transform_indices = @transform_2, window_bounds = array<i64: 1, 128>}, {pipeline_mode = #tpu.pipeline_mode<synchronous>, transform_indices = @transform_3, window_bounds = array<i64: 128, 128>}, {pipeline_mode = #tpu.pipeline_mode<synchronous>, transform_indices = @transform_4, window_bounds = array<i64: 1, 128>}, {pipeline_mode = #tpu.pipeline_mode<synchronous>, transform_indices = @transform_5, window_bounds = array<i64: 1, 128>}, {transform_indices = @transform_6, window_bounds = array<i64: 1, 8, 128>}]} {
    %c0_i32 = arith.constant 0 : i32
    %0 = arith.cmpi eq, %arg1, %c0_i32 : i32
    %1 = arith.extui %0 : i1 to i32
    %c0_i32_0 = arith.constant 0 : i32
    %2 = arith.cmpi ne, %1, %c0_i32_0 : i32
    scf.if %2 {
      %cst_20 = arith.constant 0.000000e+00 : f32
      %27 = vector.broadcast %cst_20 : f32 to vector<1x128xf32>
      %c0_21 = arith.constant 0 : index
      %c0_22 = arith.constant 0 : index
      %28 = vector.load %arg9[%c0_21, %c0_22] : memref<1x128xf32, #tpu.memory_space<vmem>>, vector<1x128xf32>
      tpu.vector_store %arg9[%c0_21, %c0_22], %27 {strides = array<i32>} : memref<1x128xf32, #tpu.memory_space<vmem>>, vector<1x128xf32>,
    } else {
    }
    %c0 = arith.constant 0 : index
    %c0_1 = arith.constant 0 : index
    %3 = vector.load %arg2[%c0, %c0_1] : memref<32x32xbf16, #tpu.memory_space<vmem>>, vector<32x32xbf16>
    %c0_2 = arith.constant 0 : index
    %c0_3 = arith.constant 0 : index
    %4 = vector.load %arg3[%c0_2, %c0_3] : memref<32x128xbf16, #tpu.memory_space<vmem>>, vector<32x128xbf16>
    %cst = arith.constant dense<0.000000e+00> : vector<32x128xf32>
    %5 = tpu.matmul %3, %4, %cst {dimension_numbers = #tpu.dot_dimension_numbers<[1], [0], [0], [1], [0, 0, 1, 1], [], []>} : vector<32x32xbf16>, vector<32x128xbf16>, vector<32x128xf32> -> vector<32x128xf32>
    %c0_4 = arith.constant 0 : index
    %c0_5 = arith.constant 0 : index
    %6 = vector.load %arg4[%c0_4, %c0_5] : memref<1x128xf32, #tpu.memory_space<vmem>>, vector<1x128xf32>
    %7 = vector.broadcast %6 : vector<1x128xf32> to vector<32x128xf32>
    %8 = arith.addf %5, %7 : vector<32x128xf32>
    %cst_6 = arith.constant 0.000000e+00 : f32
    %9 = vector.broadcast %cst_6 : f32 to vector<32x128xf32>
    %10 = arith.maximumf %8, %9 : vector<32x128xf32>
    %11 = arith.truncf %10 : vector<32x128xf32> to vector<32x128xbf16>
    %c0_7 = arith.constant 0 : index
    %c0_8 = arith.constant 0 : index
    %12 = vector.load %arg5[%c0_7, %c0_8] : memref<128x128xbf16, #tpu.memory_space<vmem>>, vector<128x128xbf16>
    %cst_9 = arith.constant dense<0.000000e+00> : vector<32x128xf32>
    %13 = tpu.matmul %11, %12, %cst_9 {dimension_numbers = #tpu.dot_dimension_numbers<[1], [0], [0], [1], [0, 0, 1, 1], [], []>} : vector<32x128xbf16>, vector<128x128xbf16>, vector<32x128xf32> -> vector<32x128xf32>
    %c0_10 = arith.constant 0 : index
    %c0_11 = arith.constant 0 : index
    %14 = vector.load %arg6[%c0_10, %c0_11] : memref<1x128xf32, #tpu.memory_space<vmem>>, vector<1x128xf32>
    %15 = vector.broadcast %14 : vector<1x128xf32> to vector<32x128xf32>
    %16 = arith.addf %13, %15 : vector<32x128xf32>
    %cst_12 = arith.constant 0.000000e+00 : f32
    %17 = vector.broadcast %cst_12 : f32 to vector<32x128xf32>
    %18 = arith.maximumf %16, %17 : vector<32x128xf32>
    %c0_13 = arith.constant 0 : index
    %c0_14 = arith.constant 0 : index
    %19 = vector.load %arg9[%c0_13, %c0_14] : memref<1x128xf32, #tpu.memory_space<vmem>>, vector<1x128xf32>
    %cst_15 = arith.constant dense<0.000000e+00> : vector<128xf32>
    %20 = vector.multi_reduction <add>, %18, %cst_15 [0] : vector<32x128xf32> to vector<128xf32>
    %21 = vector.shape_cast %20 : vector<128xf32> to vector<1x128xf32>
    %22 = arith.addf %19, %21 : vector<1x128xf32>
    %c0_16 = arith.constant 0 : index
    %c0_17 = arith.constant 0 : index
    %23 = vector.load %arg9[%c0_16, %c0_17] : memref<1x128xf32, #tpu.memory_space<vmem>>, vector<1x128xf32>
    tpu.vector_store %arg9[%c0_16, %c0_17], %22 {strides = array<i32>} : memref<1x128xf32, #tpu.memory_space<vmem>>, vector<1x128xf32>,
    %c0_i32_18 = arith.constant 0 : i32
    %24 = arith.cmpi eq, %arg1, %c0_i32_18 : i32
    %25 = arith.extui %24 : i1 to i32
    %c0_i32_19 = arith.constant 0 : i32
    %26 = arith.cmpi ne, %25, %c0_i32_19 : i32
    scf.if %26 {
      %c0_20 = arith.constant 0 : index
      %c0_21 = arith.constant 0 : index
      %27 = vector.load %arg9[%c0_20, %c0_21] : memref<1x128xf32, #tpu.memory_space<vmem>>, vector<1x128xf32>
      %c0_22 = arith.constant 0 : index
      %c0_23 = arith.constant 0 : index
      %28 = vector.load %arg7[%c0_22, %c0_23] : memref<1x128xf32, #tpu.memory_space<vmem>>, vector<1x128xf32>
      %29 = arith.mulf %27, %28 : vector<1x128xf32>
      %30 = vector.shape_cast %29 : vector<1x128xf32> to vector<1x1x128xf32>
      %cst_24 = arith.constant dense<0.000000e+00> : vector<1xf32>
      %31 = vector.multi_reduction <add>, %30, %cst_24 [1, 2] : vector<1x1x128xf32> to vector<1xf32>
      %32 = vector.shape_cast %31 : vector<1xf32> to vector<1x1x1xf32>
      %33 = vector.extract %32[0, 0, 0] : f32 from vector<1x1x1xf32>
      %34 = vector.broadcast %33 : f32 to vector<1x8x128xf32>
      %c0_25 = arith.constant 0 : index
      %c0_26 = arith.constant 0 : index
      %c0_27 = arith.constant 0 : index
      %35 = vector.load %arg8[%c0_25, %c0_26, %c0_27] : memref<1x8x128xf32, #tpu.memory_space<vmem>>, vector<1x8x128xf32>
      tpu.vector_store %arg8[%c0_25, %c0_26, %c0_27], %34 {strides = array<i32>} : memref<1x8x128xf32, #tpu.memory_space<vmem>>, vector<1x8x128xf32>,
    } else {
    }
    return
  }
  func.func @transform_0(%arg0: i32, %arg1: i32) -> (i32, i32) {
    %c1_i32 = arith.constant 1 : i32
    %0 = arith.muli %arg0, %c1_i32 : i32
    %1 = arith.addi %0, %arg1 : i32
    %c0_i32 = arith.constant 0 : i32
    %c0_i32_0 = arith.constant 0 : i32
    return %1, %c0_i32 : i32, i32
  }
  func.func @transform_1(%arg0: i32, %arg1: i32) -> (i32, i32) {
    %c0_i32 = arith.constant 0 : i32
    %c0_i32_0 = arith.constant 0 : i32
    %c0_i32_1 = arith.constant 0 : i32
    return %c0_i32, %c0_i32_0 : i32, i32
  }
  func.func @transform_2(%arg0: i32, %arg1: i32) -> (i32, i32) {
    %c0_i32 = arith.constant 0 : i32
    %c0_i32_0 = arith.constant 0 : i32
    %c0_i32_1 = arith.constant 0 : i32
    return %c0_i32, %c0_i32_0 : i32, i32
  }
  func.func @transform_3(%arg0: i32, %arg1: i32) -> (i32, i32) {
    %c0_i32 = arith.constant 0 : i32
    %c0_i32_0 = arith.constant 0 : i32
    %c0_i32_1 = arith.constant 0 : i32
    return %c0_i32, %c0_i32_0 : i32, i32
  }
  func.func @transform_4(%arg0: i32, %arg1: i32) -> (i32, i32) {
    %c0_i32 = arith.constant 0 : i32
    %c0_i32_0 = arith.constant 0 : i32
    %c0_i32_1 = arith.constant 0 : i32
    return %c0_i32, %c0_i32_0 : i32, i32
  }
  func.func @transform_5(%arg0: i32, %arg1: i32) -> (i32, i32) {
    %c0_i32 = arith.constant 0 : i32
    %c0_i32_0 = arith.constant 0 : i32
    %c0_i32_1 = arith.constant 0 : i32
    return %c0_i32, %c0_i32_0 : i32, i32
  }
  func.func @transform_6(%arg0: i32, %arg1: i32) -> (i32, i32, i32) {
    %c0_i32 = arith.constant 0 : i32
    %c0_i32_0 = arith.constant 0 : i32
    %c0_i32_1 = arith.constant 0 : i32
    return %arg0, %c0_i32, %c0_i32_0 : i32, i32, i32
  }
}

</mosaic_0001>

<llo_original>
// kernel: stack_forward.1
$region0: #{stack_forward.1}
  #allocation0 [shape = 'u32[]', space=smem, size = 0x4, offset = 0x4, fixed_abs, tag = 'smem constant byte address 0x4 - core index']
  #allocation1 [shape = 'u32[72,128]{1,0:T(1,128)}', space=vmem, size = 0x9000, scoped, tag = 'internal scratch']
  #allocation2 [shape = 'f32[1,128]{1,0:T(1,128)}', space=vmem, size = 0x200, scoped, tag = 'scratch operand']
  %s0 = inlined_call_operand.vmem [shape: bf16[64,32], index: 0, kind: input, shape index: {}]
  %s1 = inlined_call_operand.vmem [shape: bf16[32,128], index: 1, kind: input, shape index: {}]
  %s2 = inlined_call_operand.vmem [shape: f32[1,128], index: 2, kind: input, shape index: {}]
  %s3 = inlined_call_operand.vmem [shape: bf16[128,128], index: 3, kind: input, shape index: {}]
  %s4 = inlined_call_operand.vmem [shape: f32[1,128], index: 4, kind: input, shape index: {}]
  %s5 = inlined_call_operand.vmem [shape: f32[1,128], index: 5, kind: input, shape index: {}]
  %s6 = inlined_call_operand.vmem [shape: f32[2,8,128], index: 6, kind: output, shape index: {}]
  %s7 = sld [smem:[#allocation0]]
  $region65: #{stack_forward.1} parent=0
    _
  %s9 = ssub.s32 1, %s7
  %s10 = scalar_select 0, %s9, %s7
  loop: start=0, step=1, limit=4
  $region2: #{stack_forward.1} parent=0 // loop_pre_header
    _
  $region3: #{stack_forward.1} parent=0 // loop_header
    %s12 = sphi 0, %s16
    %p13 = scmp.ge.s32.totalorder %s12, 4
    %s19 = sphi 0, %s31
    %s20 = sphi 0, %s27
    %s21 = sphi 0, %s19
    %s22 = sphi 0, %s20
    %s23 = sphi 0, %s21
    %s24 = sphi 0, %s22
    %s36 = sphi 0, %s38
    %s39 = sphi 0, %s36
    %s40 = sphi 0, %s39
    %s56 = sphi 0, %s40
    %s60 = sphi 0, %s60
    %s62 = sphi 0, %s60
    %s63 = sphi 0, %s62
    %s77 = sphi 0, %s63
    %s81 = sphi 0, %s81
    %s83 = sphi 0, %s81
    %s84 = sphi 0, %s83
    %s98 = sphi 0, %s84
    %s102 = sphi 0, %s102
    %s104 = sphi 0, %s102
    %s105 = sphi 0, %s104
    %s119 = sphi 0, %s105
    %s123 = sphi 0, %s123
    %s125 = sphi 0, %s123
    %s126 = sphi 0, %s125
    %s140 = sphi 0, %s126
    %s144 = sphi 0, %s144
    %s146 = sphi 0, %s144
    %s147 = sphi 0, %s146
    %s161 = sphi 0, %s147
    %s167 = sphi 0, %s169
    %s170 = sphi 0, %s167
    %s171 = sphi 0, %s170
    %s187 = sphi 0, %s171
  $region4: #{stack_forward.1} parent=0 // loop_header_branch
    %15 = sbr.rel (%p13) target = $region8
  $region5: #{stack_forward.1} parent=0 // loop_body
    %s17 = ssub.s32 %s12, 1
    %s18 = ssub.s32 %s12, 2
    %s25 = sadd.s32 1, %s20
    %p26 = scmp.ge.s32.totalorder %s25, 1
    %s27 = scalar_select %p26, 0, %s25
    %s28 = sadd.s32 1, %s19
    %s29 = scalar_select %p26, %s28, %s19
    %p30 = scmp.ge.s32.totalorder %s29, 2
    %s31 = scalar_select %p30, 0, %s29
    %s32 = sadd.s32 %s19, %s20
    %s33 = sadd.s32 %s31, %s27
    %s34 = ssub.s32 %s32, %s33
    %p35 = scmp.eq.s32.totalorder %s34, 0
    %s37 = sadd.s32 %s36, 1
    %s38 = scalar_select %p35, %s36, %s37
    %p41 = pneg %p35
    %p42 = scmp.eq.s32.totalorder %s12, 1
    %p43 = por %p41, %p42
    %p44 = scmp.ne.s32.totalorder %s36, %s39
    %p45 = scmp.eq.s32.totalorder %s12, 0
    %p46 = por %p44, %p45
    %p47 = scmp.ne.s32.totalorder %s36, %s39
    %p48 = scmp.eq.s32.totalorder %s17, 1
    %p49 = por %p47, %p48
    %p50 = scmp.ne.s32.totalorder %s39, %s40
    %p51 = scmp.eq.s32.totalorder %s17, 0
    %p52 = por %p50, %p51
    %p53 = scmp.ne.s32.totalorder %s39, %s40
    %p54 = scmp.eq.s32.totalorder %s18, 1
    %p55 = por %p53, %p54
    %p57 = scmp.ne.s32.totalorder %s40, %s56
    %p58 = scmp.eq.s32.totalorder %s18, 0
    %p59 = por %p57, %p58
    %s61 = sadd.s32 %s60, 1
    %p64 = scmp.eq.s32.totalorder %s12, 1
    %p65 = scmp.ne.s32.totalorder %s60, %s62
    %p66 = scmp.eq.s32.totalorder %s12, 0
    %p67 = por %p65, %p66
    %p68 = scmp.ne.s32.totalorder %s60, %s62
    %p69 = scmp.eq.s32.totalorder %s17, 1
    %p70 = por %p68, %p69
    %p71 = scmp.ne.s32.totalorder %s62, %s63
    %p72 = scmp.eq.s32.totalorder %s17, 0
    %p73 = por %p71, %p72
    %p74 = scmp.ne.s32.totalorder %s62, %s63
    %p75 = scmp.eq.s32.totalorder %s18, 1
    %p76 = por %p74, %p75
    %p78 = scmp.ne.s32.totalorder %s63, %s77
    %p79 = scmp.eq.s32.totalorder %s18, 0
    %p80 = por %p78, %p79
    %s82 = sadd.s32 %s81, 1
    %p85 = scmp.eq.s32.totalorder %s12, 1
    %p86 = scmp.ne.s32.totalorder %s81, %s83
    %p87 = scmp.eq.s32.totalorder %s12, 0
    %p88 = por %p86, %p87
    %p89 = scmp.ne.s32.totalorder %s81, %s83
    %p90 = scmp.eq.s32.totalorder %s17, 1
    %p91 = por %p89, %p90
    %p92 = scmp.ne.s32.totalorder %s83, %s84
    %p93 = scmp.eq.s32.totalorder %s17, 0
    %p94 = por %p92, %p93
    %p95 = scmp.ne.s32.totalorder %s83, %s84
    %p96 = scmp.eq.s32.totalorder %s18, 1
    %p97 = por %p95, %p96
    %p99 = scmp.ne.s32.totalorder %s84, %s98
    %p100 = scmp.eq.s32.totalorder %s18, 0
    %p101 = por %p99, %p100
    %s103 = sadd.s32 %s102, 1
    %p106 = scmp.eq.s32.totalorder %s12, 1
    %p107 = scmp.ne.s32.totalorder %s102, %s104
    %p108 = scmp.eq.s32.totalorder %s12, 0
    %p109 = por %p107, %p108
    %p110 = scmp.ne.s32.totalorder %s102, %s104
    %p111 = scmp.eq.s32.totalorder %s17, 1
    %p112 = por %p110, %p111
    %p113 = scmp.ne.s32.totalorder %s104, %s105
    %p114 = scmp.eq.s32.totalorder %s17, 0
    %p115 = por %p113, %p114
    %p116 = scmp.ne.s32.totalorder %s104, %s105
    %p117 = scmp.eq.s32.totalorder %s18, 1
    %p118 = por %p116, %p117
    %p120 = scmp.ne.s32.totalorder %s105, %s119
    %p121 = scmp.eq.s32.totalorder %s18, 0
    %p122 = por %p120, %p121
    %s124 = sadd.s32 %s123, 1
    %p127 = scmp.eq.s32.totalorder %s12, 1
    %p128 = scmp.ne.s32.totalorder %s123, %s125
    %p129 = scmp.eq.s32.totalorder %s12, 0
    %p130 = por %p128, %p129
    %p131 = scmp.ne.s32.totalorder %s123, %s125
    %p132 = scmp.eq.s32.totalorder %s17, 1
    %p133 = por %p131, %p132
    %p134 = scmp.ne.s32.totalorder %s125, %s126
    %p135 = scmp.eq.s32.totalorder %s17, 0
    %p136 = por %p134, %p135
    %p137 = scmp.ne.s32.totalorder %s125, %s126
    %p138 = scmp.eq.s32.totalorder %s18, 1
    %p139 = por %p137, %p138
    %p141 = scmp.ne.s32.totalorder %s126, %s140
    %p142 = scmp.eq.s32.totalorder %s18, 0
    %p143 = por %p141, %p142
    %s145 = sadd.s32 %s144, 1
    %p148 = scmp.eq.s32.totalorder %s12, 1
    %p149 = scmp.ne.s32.totalorder %s144, %s146
    %p150 = scmp.eq.s32.totalorder %s12, 0
    %p151 = por %p149, %p150
    %p152 = scmp.ne.s32.totalorder %s144, %s146
    %p153 = scmp.eq.s32.totalorder %s17, 1
    %p154 = por %p152, %p153
    %p155 = scmp.ne.s32.totalorder %s146, %s147
    %p156 = scmp.eq.s32.totalorder %s17, 0
    %p157 = por %p155, %p156
    %p158 = scmp.ne.s32.totalorder %s146, %s147
    %p159 = scmp.eq.s32.totalorder %s18, 1
    %p160 = por %p158, %p159
    %p162 = scmp.ne.s32.totalorder %s147, %s161
    %p163 = scmp.eq.s32.totalorder %s18, 0
    %p164 = por %p162, %p163
    %s165 = ssub.s32 %s19, %s31
    %p166 = scmp.eq.s32.totalorder %s165, 0
    %s168 = sadd.s32 %s167, 1
    %s169 = scalar_select %p166, %s167, %s168
    %p172 = pneg %p166
    %p173 = scmp.eq.s32.totalorder %s12, 1
    %p174 = por %p172, %p173
    %p175 = scmp.ne.s32.totalorder %s167, %s170
    %p176 = scmp.eq.s32.totalorder %s12, 0
    %p177 = por %p175, %p176
    %p178 = scmp.ne.s32.totalorder %s167, %s170
    %p179 = scmp.eq.s32.totalorder %s17, 1
    %p180 = por %p178, %p179
    %p181 = scmp.ne.s32.totalorder %s170, %s171
    %p182 = scmp.eq.s32.totalorder %s17, 0
    %p183 = por %p181, %p182
    %p184 = scmp.ne.s32.totalorder %s170, %s171
    %p185 = scmp.eq.s32.totalorder %s18, 1
    %p186 = por %p184, %p185
    %p188 = scmp.ne.s32.totalorder %s171, %s187
    %p189 = scmp.eq.s32.totalorder %s18, 0
    %p190 = por %p188, %p189
    %p191 = scmp.le.s32.totalorder 1, %s12
    %p192 = scmp.lt.s32.totalorder %s12, 3
    %p193 = pnand %p191, %p192
    %p194 = pneg %p193
    // Predicated region
    $region9: #{stack_forward.1} parent=5 // pred_check
      _
    $region10: #{stack_forward.1} parent=5 // pred_check_branch
      %196 = sbr.rel (%p193) target = $region12
    $region11: #{stack_forward.1} parent=5 // pred_region
      %s197 = ssub.s32 %s12, 1
      // Predicated region
      $region13: #{stack_forward.1} parent=11 // pred_check
        %p198 = pneg %p73
      $region14: #{stack_forward.1} parent=11 // pred_check_branch
        %200 = sbr.rel (%p198) target = $region16
      $region15: #{stack_forward.1} parent=11 // pred_region
        _
      $region16: #{stack_forward.1} parent=11 // pred_fallthru
        _
      // Predicated region
      $region17: #{stack_forward.1} parent=11 // pred_check
        %p201 = pneg %p94
      $region18: #{stack_forward.1} parent=11 // pred_check_branch
        %203 = sbr.rel (%p201) target = $region20
      $region19: #{stack_forward.1} parent=11 // pred_region
        _
      $region20: #{stack_forward.1} parent=11 // pred_fallthru
        _
      // Predicated region
      $region21: #{stack_forward.1} parent=11 // pred_check
        %p204 = pneg %p115
      $region22: #{stack_forward.1} parent=11 // pred_check_branch
        %206 = sbr.rel (%p204) target = $region24
      $region23: #{stack_forward.1} parent=11 // pred_region
        _
      $region24: #{stack_forward.1} parent=11 // pred_fallthru
        _
      // Predicated region
      $region25: #{stack_forward.1} parent=11 // pred_check
        %p207 = pneg %p136
      $region26: #{stack_forward.1} parent=11 // pred_check_branch
        %209 = sbr.rel (%p207) target = $region28
      $region27: #{stack_forward.1} parent=11 // pred_region
        _
      $region28: #{stack_forward.1} parent=11 // pred_fallthru
        _
      // Predicated region
      $region29: #{stack_forward.1} parent=11 // pred_check
        %p210 = pneg %p157
      $region30: #{stack_forward.1} parent=11 // pred_check_branch
        %212 = sbr.rel (%p210) target = $region32
      $region31: #{stack_forward.1} parent=11 // pred_region
        _
      $region32: #{stack_forward.1} parent=11 // pred_fallthru
        _
    $region12: #{stack_forward.1} parent=5 // pred_fallthru
      _
    %p213 = scmp.lt.s32.totalorder %s12, 2
    // Predicated region
    $region33: #{stack_forward.1} parent=5 // pred_check
      %p214 = pneg %p213
    $region34: #{stack_forward.1} parent=5 // pred_check_branch
      %216 = sbr.rel (%p214) target = $region36
    $region35: #{stack_forward.1} parent=5 // pred_region
      // Predicated region
      $region37: #{stack_forward.1} parent=35 // pred_check
        %p217 = pneg %p46
      $region38: #{stack_forward.1} parent=35 // pred_check_branch
        %219 = sbr.rel (%p217) target = $region40
      $region39: #{stack_forward.1} parent=35 // pred_region
        %s220 = sadd.s32 %s19, %s20
        %s221 = smul.u32 4, %s220
        %p222 = scmp.lt.s32.totalorder %s221, 7
        %s223 = scalar_select %p222, %s221, 7
        %s224 = smul.addr %s223, 4
        %s225 = scalar_lea.vmem %s0, %s224
        %s226 = sadd.s32 %s19, %s20
        %s227 = smul.u32 4, %s226
      $region40: #{stack_forward.1} parent=35 // pred_fallthru
        _
    $region36: #{stack_forward.1} parent=5 // pred_fallthru
      _
    %p228 = scmp.le.s32.totalorder 1, %s12
    %p229 = scmp.lt.s32.totalorder %s12, 3
    %p230 = pnand %p228, %p229
    %p231 = pneg %p230
    // Predicated region
    $region41: #{stack_forward.1} parent=5 // pred_check
      _
    $region42: #{stack_forward.1} parent=5 // pred_check_branch
      %233 = sbr.rel (%p230) target = $region44
    $region43: #{stack_forward.1} parent=5 // pred_region
      %s234 = ssub.s32 %s12, 1
      %s235 = sadd.s32 %s21, %s22
      %s236 = smul.u32 4, %s235
      %p237 = scmp.lt.s32.totalorder %s236, 7
      %s238 = scalar_select %p237, %s236, 7
      %s239 = smul.addr %s238, 4
      %s240 = scalar_lea.vmem %s0, %s239
      %p241 = pneg %p52
      %p242 = pneg %p49
      %p243 = pneg %p73
      %p244 = pneg %p70
      %p245 = pneg %p94
      %p246 = pneg %p91
      %p247 = pneg %p115
      %p248 = pneg %p112
      %p249 = pneg %p136
      %p250 = pneg %p133
      %p251 = pneg %p157
      %p252 = pneg %p154
      %p253 = pneg %p183
      %p254 = pneg %p180
      %p255 = scmp.lt.s32.totalorder %s21, 1
      %s256 = scalar_select %p255, %s21, 1
      %s257 = smul.addr %s256, 8
      %s258 = scalar_lea.vmem %s6, %s257
      %s259 = sadd.s32 %s21, %s22
      %s260 = smul.u32 4, %s259
      %p261 = scmp.lt.s32.totalorder %s260, 7
      %s262 = scalar_select %p261, %s260, 7
      %s263 = smul.addr %s262, 4
      %s264 = scalar_lea.vmem %s0, %s263
      %s265 = sadd.s32 %s21, %s22
      %s266 = smul.u32 4, %s265
      %p267 = scmp.lt.s32.totalorder %s21, 1
      %s268 = scalar_select %p267, %s21, 1
      %s269 = smul.addr %s268, 8
      %s270 = scalar_lea.vmem %s6, %s269
      %p272 = scmp.eq.s32.totalorder %s22, 0
      // Predicated region
      $region45: #{stack_forward.1} parent=43 // pred_check
        %p273 = pneg %p272
      $region46: #{stack_forward.1} parent=43 // pred_check_branch
        %275 = sbr.rel (%p273) target = $region48
      $region47: #{stack_forward.1} parent=43 // pred_region
        %276 = vst [vmem:[#allocation2] sm:$0x1] 0.0
      $region48: #{stack_forward.1} parent=43 // pred_fallthru
        _
      %v277 = vld [vmem:[%s264] sm:$0xf]
      %v278 = vld [vmem:[%s264 + $0x4] sm:$0xf]
      %v279 = vld [vmem:[%s264 + $0x8] sm:$0xf]
      %v280 = vld [vmem:[%s264 + $0xc] sm:$0xf]
      %v281 = vld [vmem:[%s1] sm:$0xf]
      %v282 = vld [vmem:[%s1 + $0x4] sm:$0xf]
      %v283 = vld [vmem:[%s1 + $0x8] sm:$0xf]
      %v284 = vld [vmem:[%s1 + $0xc] sm:$0xf]
      %v285 = vld [vmem:[%s2] sm:$0x1]
      %v287 = vperm.slane %v285, 0
      %v293 = vunpack.c.l.b16 %v277
      %v294 = vunpack.c.l.b16 %v278
      %v295 = vunpack.c.l.b16 %v279
      %v296 = vunpack.c.l.b16 %v280
      %v297 = vpack.c.b16 %v294, %v293
      %v298 = vpack.c.b16 %v296, %v295
      %v303 = vunpack.c.l.b16 %v281
      %v304 = vunpack.c.l.b16 %v282
      %v305 = vunpack.c.l.b16 %v283
      %v306 = vunpack.c.l.b16 %v284
      %v307 = vpack.c.b16 %v304, %v303
      %v308 = vpack.c.b16 %v306, %v305
      %vm311 = vcmask 261120
      %v313 = vsel %vm311, %v297, 0
      %v316 = vsel %vm311, %v298, 0
      %318 = vmatpush.bf16.msra.mxu0 0
      %319 = vmatpush.bf16.msra.mxu0 0
      %320 = vmatpush.bf16.msra.mxu0 0
      %321 = vmatpush.bf16.msra.mxu0 0
      %322 = vmatpush.bf16.msra.mxu0 0
      %323 = vmatpush.bf16.msra.mxu0 0
      %324 = vmatpush.bf16.msra.mxu0 %v308
      %325 = vmatpush.bf16.msra.mxu0 %v307
      %326 = vmatmul.bf16.gmra.mxu0 %v313
      %v327 = vpop.f32.mrf.mxu0
      %v328 = vadd.f32 %v287, %v327
      %v329 = vpop.f32.mrf.mxu0
      %v330 = vadd.f32 %v287, %v329
      %331 = vmatmul.bf16.gmra.mxu0 %v316
      %v332 = vpop.f32.mrf.mxu0
      %v333 = vadd.f32 %v287, %v332
      %v334 = vpop.f32.mrf.mxu0
      %v335 = vadd.f32 %v287, %v334
      %336 = vdwg.mxu0
      %v337 = vmax.f32 %v328, 0.0
      %v338 = vmax.f32 %v330, 0.0
      %v339 = vmax.f32 %v333, 0.0
      %v340 = vmax.f32 %v335, 0.0
      %v341 = vpack.c.bf16 %v338, %v337
      %v342 = vpack.c.bf16 %v340, %v339
      %v343 = vld [vmem:[%s3] sm:$0xf]
      %v344 = vld [vmem:[%s3 + $0x4] sm:$0xf]
      %v345 = vld [vmem:[%s3 + $0x8] sm:$0xf]
      %v346 = vld [vmem:[%s3 + $0xc] sm:$0xf]
      %v347 = vld [vmem:[%s3 + $0x10] sm:$0xf]
      %v348 = vld [vmem:[%s3 + $0x14] sm:$0xf]
      %v349 = vld [vmem:[%s3 + $0x18] sm:$0xf]
      %v350 = vld [vmem:[%s3 + $0x1c] sm:$0xf]
      %v351 = vld [vmem:[%s3 + $0x20] sm:$0xf]
      %v352 = vld [vmem:[%s3 + $0x24] sm:$0xf]
      %v353 = vld [vmem:[%s3 + $0x28] sm:$0xf]
      %v354 = vld [vmem:[%s3 + $0x2c] sm:$0xf]
      %v355 = vld [vmem:[%s3 + $0x30] sm:$0xf]
      %v356 = vld [vmem:[%s3 + $0x34] sm:$0xf]
      %v357 = vld [vmem:[%s3 + $0x38] sm:$0xf]
      %v358 = vld [vmem:[%s3 + $0x3c] sm:$0xf]
      %v359 = vld [vmem:[%s4] sm:$0x1]
      %v361 = vperm.slane %v359, 0
      %v379 = vunpack.c.l.b16 %v343
      %v380 = vunpack.c.l.b16 %v344
      %v381 = vunpack.c.l.b16 %v345
      %v382 = vunpack.c.l.b16 %v346
      %v383 = vunpack.c.l.b16 %v347
      %v384 = vunpack.c.l.b16 %v348
      %v385 = vunpack.c.l.b16 %v349
      %v386 = vunpack.c.l.b16 %v350
      %v387 = vunpack.c.l.b16 %v351
      %v388 = vunpack.c.l.b16 %v352
      %v389 = vunpack.c.l.b16 %v353
      %v390 = vunpack.c.l.b16 %v354
      %v391 = vunpack.c.l.b16 %v355
      %v392 = vunpack.c.l.b16 %v356
      %v393 = vunpack.c.l.b16 %v357
      %v394 = vunpack.c.l.b16 %v358
      %v395 = vpack.c.b16 %v380, %v379
      %v396 = vpack.c.b16 %v382, %v381
      %v397 = vpack.c.b16 %v384, %v383
      %v398 = vpack.c.b16 %v386, %v385
      %v399 = vpack.c.b16 %v388, %v387
      %v400 = vpack.c.b16 %v390, %v389
      %v401 = vpack.c.b16 %v392, %v391
      %v402 = vpack.c.b16 %v394, %v393
      %411 = vmatpush.bf16.msra.mxu0 %v402
      %412 = vmatpush.bf16.msra.mxu0 %v401
      %413 = vmatpush.bf16.msra.mxu0 %v400
      %414 = vmatpush.bf16.msra.mxu0 %v399
      %415 = vmatpush.bf16.msra.mxu0 %v398
      %416 = vmatpush.bf16.msra.mxu0 %v397
      %417 = vmatpush.bf16.msra.mxu0 %v396
      %418 = vmatpush.bf16.msra.mxu0 %v395
      %419 = vmatmul.bf16.gmra.mxu0 %v341
      %v420 = vpop.f32.mrf.mxu0
      %v421 = vadd.f32 %v361, %v420
      %v422 = vpop.f32.mrf.mxu0
      %v423 = vadd.f32 %v361, %v422
      %424 = vmatmul.bf16.gmra.mxu0 %v342
      %v425 = vpop.f32.mrf.mxu0
      %v426 = vadd.f32 %v361, %v425
      %v427 = vpop.f32.mrf.mxu0
      %v428 = vadd.f32 %v361, %v427
      %429 = vdwg.mxu0
      %v430 = vmax.f32 %v421, 0.0
      %v431 = vmax.f32 %v423, 0.0
      %v432 = vmax.f32 %v426, 0.0
      %v433 = vmax.f32 %v428, 0.0
      %v434 = vld [vmem:[#allocation2] sm:$0x1]
      %v435 = vadd.f32 %v430, %v431
      %v436 = vadd.f32 %v435, %v432
      %v437 = vadd.f32 %v436, %v433
      %v438 = vrot.slane %v437, 4
      %v439 = vadd.f32 %v437, %v438
      %v440 = vrot.slane %v439, 2
      %v441 = vadd.f32 %v439, %v440
      %v442 = vrot.slane %v441, 1
      %v443 = vadd.f32 %v441, %v442
      %v444 = vadd.f32 %v434, %v443
      %445 = vst [vmem:[#allocation2] sm:$0x1] %v444
      // Predicated region
      $region49: #{stack_forward.1} parent=43 // pred_check
        %p446 = pneg %p272
      $region50: #{stack_forward.1} parent=43 // pred_check_branch
        %448 = sbr.rel (%p446) target = $region52
      $region51: #{stack_forward.1} parent=43 // pred_region
        %v449 = vld [vmem:[#allocation2] sm:$0x1]
        %v450 = vld [vmem:[%s5] sm:$0x1]
        %v451 = vmul.f32 %v449, %v450
        %vm452 = vcmask 1040384
        %v453 = vsel %vm452, %v451, 0.0
        %454 = vadd.xlane.f32.xlu0 %v453
        %v455 = vpop.xlane.xlu0 %454
        %v456 = vrot.slane %v455, 4
        %v457 = vadd.f32 %v455, %v456
        %v458 = vrot.slane %v457, 2
        %v459 = vadd.f32 %v457, %v458
        %v460 = vrot.slane %v459, 1
        %v461 = vadd.f32 %v459, %v460
        %s462 = vtos %v461
        %v463 = vstv %s462
        %464 = vst [vmem:[%s270] sm:$0xff] %v463
      $region52: #{stack_forward.1} parent=43 // pred_fallthru
        _
      %p465 = scmp.lt.s32.totalorder %s21, 1
      %s466 = scalar_select %p465, %s21, 1
      %s467 = smul.addr %s466, 8
      %s468 = scalar_lea.vmem %s6, %s467
      // Predicated region
      $region53: #{stack_forward.1} parent=43 // pred_check
        %p469 = pneg %p180
      $region54: #{stack_forward.1} parent=43 // pred_check_branch
        %471 = sbr.rel (%p469) target = $region56
      $region55: #{stack_forward.1} parent=43 // pred_region
        _
      $region56: #{stack_forward.1} parent=43 // pred_fallthru
        _
    $region44: #{stack_forward.1} parent=5 // pred_fallthru
      _
    %p472 = scmp.le.s32.totalorder 2, %s12
    // Predicated region
    $region57: #{stack_forward.1} parent=5 // pred_check
      %p473 = pneg %p472
    $region58: #{stack_forward.1} parent=5 // pred_check_branch
      %475 = sbr.rel (%p473) target = $region60
    $region59: #{stack_forward.1} parent=5 // pred_region
      %s476 = ssub.s32 %s12, 2
      // Predicated region
      $region61: #{stack_forward.1} parent=59 // pred_check
        %p477 = pneg %p186
      $region62: #{stack_forward.1} parent=59 // pred_check_branch
        %479 = sbr.rel (%p477) target = $region64
      $region63: #{stack_forward.1} parent=59 // pred_region
        %p480 = scmp.lt.s32.totalorder %s23, 1
        %s481 = scalar_select %p480, %s23, 1
        %s482 = smul.addr %s481, 8
        %s483 = scalar_lea.vmem %s6, %s482
      $region64: #{stack_forward.1} parent=59 // pred_fallthru
        _
    $region60: #{stack_forward.1} parent=5 // pred_fallthru
      _
  $region6: #{stack_forward.1} parent=0 // loop_footer
    %s16 = sadd.s32 1, %s12
  $region7: #{stack_forward.1} parent=0 // loop_footer_branch
    %11 = sbr.rel target = $region3
  $region8: #{stack_forward.1} parent=0 // loop_exit
    _

</llo_original>
